<compile_context>
chip_gen: v5e
topology: v5e:2x2
jax: 0.10.0
libtpu: 0.0.40
codegen_flags: <defaults>
</compile_context>

<pallas_src>
import functools
import math

import numpy as np

import jax
import jax.numpy as jnp
from jax.experimental import pallas as pl
from jax.experimental.pallas import tpu as pltpu


# ----------------------------------------------------------------------------
# Kernel 1: image-level semantic_transform_in (1x1 conv + relu), packed with
# (optionally sigmoided) semantic_pred so the per-ROI kernel gets one operand.
# Output is bf16 (it is only consumed by the RoIAlign matmul).
# ----------------------------------------------------------------------------
def _sem_prep_kernel(x_ref, p_ref, w_ref, b_ref, o_ref, *, use_sigmoid):
    c_out = w_ref.shape[0]
    y = jnp.dot(w_ref[...], x_ref[...].astype(jnp.bfloat16),
                preferred_element_type=jnp.float32) + b_ref[...]
    o_ref[:c_out, :] = jnp.maximum(y, 0.0).astype(o_ref.dtype)
    p = p_ref[...]
    if use_sigmoid:
        p = jax.nn.sigmoid(p)
    o_ref[c_out:, :] = p.astype(o_ref.dtype)


def semantic_prepare(sem_flat, pred_flat, w, b, use_sigmoid):
    c_out = w.shape[0]
    hw = sem_flat.shape[1]
    return pl.pallas_call(
        functools.partial(_sem_prep_kernel, use_sigmoid=use_sigmoid),
        out_shape=jax.ShapeDtypeStruct((c_out + 1, hw), jnp.bfloat16),
        in_specs=[pl.BlockSpec(memory_space=pltpu.MemorySpace.VMEM)] * 4,
        out_specs=pl.BlockSpec(memory_space=pltpu.MemorySpace.VMEM),
    )(sem_flat, pred_flat, w, b)


# ----------------------------------------------------------------------------
# Kernel 2: the whole SFM stage, one grid step per ROI.
# ----------------------------------------------------------------------------
def _sfm_stage_kernel(labels_ref,
                      xi_ref, semcw_ref, mxp_ref, myp_ref,
                      wlg_ref, blg_ref, wsto_ref, bsto_ref,
                      wf0xi_ref, wf0sem_ref, wf0im_ref, wf0sm_ref, bf0_ref,
                      wd_ref, bd_ref, wmg_ref, bmg_ref, wto_ref, bto_ref,
                      tpf_ref, uf_ref, ut_ref,
                      preds_ref, fused_ref,
                      x0pf_ref,
                      *, H, W, dmax, dilations, use_sigmoid):
    f32 = jnp.float32
    bf16 = jnp.bfloat16

    r = pl.program_id(0)
    wp = W + 2 * dmax
    q0 = dmax * wp + dmax
    L = (H - 1) * wp + W
    P = H * W

    ci = xi_ref.shape[1]            # instance channels
    cs = wsto_ref.shape[0]          # semantic channels
    nc = wlg_ref.shape[0]           # num classes
    co2 = wto_ref.shape[0]          # instance_out_channel - 2
    hf = myp_ref.shape[1]           # semantic feature height
    csem = cs + 1

    xi = xi_ref[0]                                                   # (Ci, P) f32
    xi_bf = xi.astype(bf16)

    # -- instance logits: compute only the selected class row ----------------
    lbl = jnp.maximum(labels_ref[r], 0)                              # -1 -> 0
    sel = jax.lax.broadcasted_iota(jnp.int32, (nc, 1), 0) == lbl
    w_row = jnp.sum(jnp.where(sel, wlg_ref[...], 0.0), axis=0, keepdims=True)  # (1, Ci)
    b_row = jnp.sum(jnp.where(sel, blg_ref[...], 0.0), axis=0, keepdims=True)  # (1, 1)
    pred = jnp.dot(w_row.astype(bf16), xi_bf, preferred_element_type=f32) + b_row
    preds_ref[0] = pred
    inst_mask = jax.nn.sigmoid(pred) if use_sigmoid else pred        # (1, P) f32

    # -- separable RoIAlign of [relu(sem_in(sem)); sem_pred] ------------------
    #    w-contraction: one lane-dense bf16 matmul; h-contraction: broadcast
    #    multiply by the lane-expanded 1-D factor + sublane reduction.
    t2 = jnp.dot(semcw_ref[...], mxp_ref[0], preferred_element_type=f32)  # ((Cs+1)*Hf, P)
    pooled = jnp.sum(t2.reshape(csem, hf, P) * myp_ref[0][None, :, :], axis=1)  # (Cs+1, P)
    sem_roi = pooled[:cs, :]                                          # (Cs, P)  (row 16 is aligned)
    sem_mask = pooled[cs:, :]                                         # (1, P)
    sem_t = jnp.maximum(
        jnp.dot(wsto_ref[...], sem_roi.astype(bf16), preferred_element_type=f32)
        + bsto_ref[...], 0.0)                                         # (Cs, P)

    # -- fuse_conv[0]: 1x1 + relu, split over the concat segments (no concat
    #    buffer store+reload); the two single-column segments are VPU outer
    #    products. --------------------------------------------------------
    x0 = (jnp.dot(wf0xi_ref[...], xi_bf, preferred_element_type=f32)
          + jnp.dot(wf0sem_ref[...], sem_t.astype(bf16), preferred_element_type=f32)
          + wf0im_ref[...] * inst_mask
          + wf0sm_ref[...] * sem_mask
          + bf0_ref[...])
    x0 = jnp.maximum(x0, 0.0)                                         # (Ci, P)

    # interior-flat -> zero-padded-flat scatter (0/1 placement matmul); the
    # gutter stays exactly zero, which is the conv's zero padding.
    x0pf_ref[...] = jnp.dot(x0.astype(bf16), tpf_ref[...],
                            preferred_element_type=f32).astype(bf16)  # (Ci, PF)

    # -- MultiBranchFusion: 3 dilated 3x3 convs (+relu), sum, 1x1 merge, relu.
    #    Each branch is 9 accumulating (Ci,Ci)@(Ci,L) dots reading the padded
    #    buffer slices directly (no im2col scratch). -------------------------
    acc = jnp.zeros((ci, L), f32)
    for bi, d in enumerate(dilations):
        br = jnp.zeros((ci, L), f32)
        for ky in range(3):
            for kx in range(3):
                t = ky * 3 + kx
                s = q0 + (ky - 1) * d * wp + (kx - 1) * d
                br = br + jnp.dot(wd_ref[bi, t], x0pf_ref[:, s:s + L],
                                  preferred_element_type=f32)
        acc = acc + jnp.maximum(br + bd_ref[bi], 0.0)
    x1 = jnp.maximum(
        jnp.dot(wmg_ref[...], acc.astype(bf16), preferred_element_type=f32)
        + bmg_ref[...], 0.0)                                          # (Ci, L)

    # -- fuse_transform_out: 1x1 + relu ---------------------------------------
    x2 = jnp.maximum(
        jnp.dot(wto_ref[...], x1.astype(bf16), preferred_element_type=f32)
        + bto_ref[...], 0.0)                                          # (Co2, L)

    # -- bilinear x2 upsample (features: align_corners=False; masks: True) and
    #    channel concat.  The reference's post-upsample ReLU is a no-op here
    #    (x2 >= 0 and the interpolation weights are >= 0), so it is dropped. --
    fused_ref[0, :co2, :] = jnp.dot(x2.astype(bf16), uf_ref[...],
                                    preferred_element_type=f32)
    fused_ref[0, co2:co2 + 1, :] = jnp.dot(inst_mask.astype(bf16), ut_ref[...],
                                           preferred_element_type=f32)
    fused_ref[0, co2 + 1:, :] = jnp.dot(sem_mask.astype(bf16), ut_ref[...],
                                        preferred_element_type=f32)


def _sfm_stage_call(xi_flat, sem_cw, mxp, myp, params, mats, roi_labels,
                    *, H, W, dmax, dilations, use_sigmoid):
    R, Ci, P = xi_flat.shape
    CsemHf, Wf = sem_cw.shape
    Hf = myp.shape[1]
    Cs = params["w_sto"].shape[0]
    NC = params["w_logits"].shape[0]
    Co2 = params["w_fto"].shape[0]
    Co = Co2 + 2
    nb = params["w_d"].shape[0]
    PF = mats["t_pf"].shape[1]
    L = mats["u_false"].shape[0]

    grid_spec = pltpu.PrefetchScalarGridSpec(
        num_scalar_prefetch=1,
        grid=(R,),
        in_specs=[
            pl.BlockSpec((1, Ci, P), lambda r, lbl: (r, 0, 0)),          # instance feats
            pl.BlockSpec((CsemHf, Wf), lambda r, lbl: (0, 0)),           # semantic (C*Hf, Wf)
            pl.BlockSpec((1, Wf, P), lambda r, lbl: (r, 0, 0)),          # MXP per ROI
            pl.BlockSpec((1, Hf, P), lambda r, lbl: (r, 0, 0)),          # MYP per ROI
            pl.BlockSpec((NC, Ci), lambda r, lbl: (0, 0)),
            pl.BlockSpec((NC, 1), lambda r, lbl: (0, 0)),
            pl.BlockSpec((Cs, Cs), lambda r, lbl: (0, 0)),
            pl.BlockSpec((Cs, 1), lambda r, lbl: (0, 0)),
            pl.BlockSpec((Ci, Ci), lambda r, lbl: (0, 0)),               # w_f0_xi
            pl.BlockSpec((Ci, Cs), lambda r, lbl: (0, 0)),               # w_f0_sem
            pl.BlockSpec((Ci, 1), lambda r, lbl: (0, 0)),                # w_f0_im
            pl.BlockSpec((Ci, 1), lambda r, lbl: (0, 0)),                # w_f0_sm
            pl.BlockSpec((Ci, 1), lambda r, lbl: (0, 0)),                # b_f0
            pl.BlockSpec((nb, 9, Ci, Ci), lambda r, lbl: (0, 0, 0, 0)),  # w_d
            pl.BlockSpec((nb, Ci, 1), lambda r, lbl: (0, 0, 0)),         # b_d
            pl.BlockSpec((Ci, Ci), lambda r, lbl: (0, 0)),               # w_mrg
            pl.BlockSpec((Ci, 1), lambda r, lbl: (0, 0)),
            pl.BlockSpec((Co2, Ci), lambda r, lbl: (0, 0)),              # w_fto
            pl.BlockSpec((Co2, 1), lambda r, lbl: (0, 0)),
            pl.BlockSpec((P, PF), lambda r, lbl: (0, 0)),                # placement
            pl.BlockSpec((L, 4 * P), lambda r, lbl: (0, 0)),             # upsample (feat)
            pl.BlockSpec((P, 4 * P), lambda r, lbl: (0, 0)),             # upsample (masks)
        ],
        out_specs=[
            pl.BlockSpec((1, 1, P), lambda r, lbl: (r, 0, 0)),
            pl.BlockSpec((1, Co, 4 * P), lambda r, lbl: (r, 0, 0)),
        ],
        scratch_shapes=[
            pltpu.VMEM((Ci, PF), jnp.bfloat16),   # zero-padded flat fuse_conv output
        ],
    )

    # Rough cost hints for the XLA scheduler.
    flops_per_roi = 2 * (
        (Cs + 1) * Hf * Wf * P
        + (Cs + 1) * Hf * P
        + Ci * P
        + Cs * Cs * P
        + (Ci * Ci + Ci * Cs + 2 * Ci) * P
        + Ci * P * PF
        + nb * 9 * Ci * Ci * L
        + Ci * Ci * L
        + Co2 * Ci * L
        + Co2 * L * 4 * P
        + 2 * P * 4 * P)
    const_bytes = sum(int(np.prod(a.shape)) * a.dtype.itemsize
                      for a in (mats["t_pf"], mats["u_false"], mats["u_true"], sem_cw))
    bytes_accessed = int(R * (4 * Ci * P + 2 * Wf * P + 4 * Hf * P
                              + 4 * P + 4 * Co * 4 * P) + const_bytes)
    cost = pl.CostEstimate(flops=int(R * flops_per_roi),
                           transcendentals=int(R * P) if use_sigmoid else 0,
                           bytes_accessed=bytes_accessed)

    kernel = functools.partial(_sfm_stage_kernel, H=H, W=W, dmax=dmax,
                               dilations=tuple(dilations), use_sigmoid=use_sigmoid)
    preds, fused = pl.pallas_call(
        kernel,
        grid_spec=grid_spec,
        out_shape=(jax.ShapeDtypeStruct((R, 1, P), jnp.float32),
                   jax.ShapeDtypeStruct((R, Co, 4 * P), jnp.float32)),
        compiler_params=pltpu.CompilerParams(
            dimension_semantics=("parallel",),
            vmem_limit_bytes=32 * 1024 * 1024),
        cost_estimate=cost,
    )(roi_labels, xi_flat, sem_cw, mxp, myp,
      params["w_logits"], params["b_logits"],
      params["w_sto"], params["b_sto"],
      params["w_f0_xi"], params["w_f0_sem"], params["w_f0_im"], params["w_f0_sm"],
      params["b_f0"],
      params["w_d"], params["b_d"],
      params["w_mrg"], params["b_mrg"],
      params["w_fto"], params["b_fto"],
      mats["t_pf"], mats["u_false"], mats["u_true"])
    return preds, fused


# ----------------------------------------------------------------------------
# Host-side (numpy) 1-D interpolation / placement builders.
# ----------------------------------------------------------------------------
def _roi_align_1d(start, length, n_out, n_feat):
    """1-D factor of mmcv RoIAlign (aligned=True, avg pool, sampling_ratio=0)."""
    grid = max(int(math.ceil(length / n_out)), 1)
    bin_sz = length / n_out
    m = np.zeros((n_out, n_feat), np.float32)
    for o in range(n_out):
        for g in range(grid):
            c = start + o * bin_sz + (g + 0.5) * bin_sz / grid
            if c < -1.0 or c > n_feat:
                continue
            c = max(c, 0.0)
            lo = int(c)
            if lo >= n_feat - 1:
                lo = hi = n_feat - 1
                frac = 0.0
            else:
                hi = lo + 1
                frac = c - lo
            m[o, lo] += (1.0 - frac) / grid
            m[o, hi] += frac / grid
    return m


def build_roi_align_factors(rois, spatial_scale, out_h, out_w, hf, wf):
    # TODO(synk): roi sampling-grid generation (data-dependent bin counts) stays
    # host-side numpy; fully on-device dynamic rois would need a scalar-prefetch
    # gather kernel.  Only the tiny 1-D factors are built here (no dense Kron).
    mxps, myps = [], []
    for roi in np.asarray(rois, np.float64):
        _, x1, y1, x2, y2 = roi
        start_w = x1 * spatial_scale - 0.5
        start_h = y1 * spatial_scale - 0.5
        len_w = (x2 - x1) * spatial_scale
        len_h = (y2 - y1) * spatial_scale
        my = _roi_align_1d(start_h, len_h, out_h, hf)          # (out_h, hf)
        mx = _roi_align_1d(start_w, len_w, out_w, wf)          # (out_w, wf)
        # MXP[w, a*out_w + b] = mx[b, w] ; MYP[h, a*out_w + b] = my[a, h]
        mxps.append(np.tile(mx.T, (1, out_h)))                 # (wf, out_h*out_w)
        myps.append(np.repeat(my.T, out_w, axis=1))            # (hf, out_h*out_w)
    mxp = jnp.asarray(np.stack(mxps), jnp.bfloat16)            # (R, wf, P) matmul operand
    myp = jnp.asarray(np.stack(myps), jnp.float32)             # (R, hf, P) VPU operand
    return mxp, myp


def _upsample_1d(n_in, n_out, align_corners):
    m = np.zeros((n_out, n_in), np.float32)
    for o in range(n_out):
        if align_corners:
            src = o * (n_in - 1) / (n_out - 1) if n_out > 1 else 0.0
        else:
            src = max((o + 0.5) * n_in / n_out - 0.5, 0.0)
        lo = min(int(math.floor(src)), n_in - 1)
        hi = min(lo + 1, n_in - 1)
        frac = src - lo
        m[o, lo] += 1.0 - frac
        m[o, hi] += frac
    return m


def build_fixed_matrices(h, w, dmax):
    wp = w + 2 * dmax
    hp = h + 2 * dmax
    L = (h - 1) * wp + w
    # interior-flat -> padded-flat placement (zero gutter == conv zero padding)
    t_pf = np.zeros((h * w, hp * wp), np.float32)
    for yy in range(h):
        for xx in range(w):
            t_pf[yy * w + xx, (yy + dmax) * wp + (xx + dmax)] = 1.0
    # x2 bilinear (align_corners=False) on the L-flat conv output
    mh = _upsample_1d(h, 2 * h, False)
    mw = _upsample_1d(w, 2 * w, False)
    full = np.einsum("yh,xw->hwyx", mh, mw).reshape(h, w, 4 * h * w)
    u_false = np.zeros((L, 4 * h * w), np.float32)
    for yy in range(h):
        for xx in range(w):
            u_false[yy * wp + xx] = full[yy, xx]
    # x2 bilinear (align_corners=True) on interior-flat mask channels
    mh_t = _upsample_1d(h, 2 * h, True)
    mw_t = _upsample_1d(w, 2 * w, True)
    u_true = np.einsum("yh,xw->hwyx", mh_t, mw_t).reshape(h * w, 4 * h * w)
    return dict(t_pf=jnp.asarray(t_pf, jnp.bfloat16),
                u_false=jnp.asarray(u_false, jnp.bfloat16),
                u_true=jnp.asarray(u_true, jnp.bfloat16))


# ----------------------------------------------------------------------------
# Parameters (deterministic synthetic init: kaiming-normal fan_out, zero bias).
# Matmul weights are stored in bf16; biases / VPU-only weights stay f32.
# ----------------------------------------------------------------------------
def init_params(key, *, c_sem_in, c_sem_out, c_inst_in, c_inst_out,
                num_classes, dilations):
    bf16 = jnp.bfloat16

    def kaiming(k, cout, cin, ksz):
        fan_out = cout * ksz * ksz
        std = math.sqrt(2.0 / fan_out)
        shape = (cout, cin) if ksz == 1 else (cout, cin, ksz, ksz)
        return jax.random.normal(k, shape, jnp.float32) * std

    keys = jax.random.split(key, 8 + len(dilations))
    cf = c_inst_in + c_sem_out + 2
    wd = []
    for i in range(len(dilations)):
        wconv = kaiming(keys[6 + i], c_inst_in, c_inst_in, 3)   # (Co, Ci, 3, 3)
        # -> (9 taps, Co, Ci); tap index t = ky*3 + kx matches the kernel loop.
        wd.append(jnp.transpose(wconv, (2, 3, 0, 1)).reshape(9, c_inst_in, c_inst_in))
    w_f0 = kaiming(keys[3], c_inst_in, cf, 1)                   # (Ci, Cf)
    return dict(
        w_sem_in=kaiming(keys[0], c_sem_out, c_sem_in, 1).astype(bf16),
        b_sem_in=jnp.zeros((c_sem_out, 1), jnp.float32),
        w_sto=kaiming(keys[1], c_sem_out, c_sem_out, 1).astype(bf16),
        b_sto=jnp.zeros((c_sem_out, 1), jnp.float32),
        w_logits=kaiming(keys[2], num_classes, c_inst_in, 1),   # f32 (class select)
        b_logits=jnp.zeros((num_classes, 1), jnp.float32),
        w_f0_xi=w_f0[:, :c_inst_in].astype(bf16),
        w_f0_sem=w_f0[:, c_inst_in:c_inst_in + c_sem_out].astype(bf16),
        w_f0_im=w_f0[:, cf - 2:cf - 1],                         # f32, VPU outer product
        w_f0_sm=w_f0[:, cf - 1:cf],                             # f32, VPU outer product
        b_f0=jnp.zeros((c_inst_in, 1), jnp.float32),
        w_d=jnp.stack(wd).astype(bf16),                         # (nb, 9, Ci, Ci)
        b_d=jnp.zeros((len(dilations), c_inst_in, 1), jnp.float32),
        w_mrg=kaiming(keys[4], c_inst_in, c_inst_in, 1).astype(bf16),
        b_mrg=jnp.zeros((c_inst_in, 1), jnp.float32),
        w_fto=kaiming(keys[5], c_inst_out - 2, c_inst_in, 1).astype(bf16),
        b_fto=jnp.zeros((c_inst_out - 2, 1), jnp.float32),
    )


# ----------------------------------------------------------------------------
# SFMStage.forward
# ----------------------------------------------------------------------------
def sfm_stage_forward(params, instance_feats, semantic_feat, semantic_pred,
                      rois, roi_labels, *, semantic_out_stride=4,
                      dilations=(1, 3, 5), mask_use_sigmoid=False):
    R, Ci, H, W = instance_feats.shape
    _, Cs_in, Hf, Wf = semantic_feat.shape
    Cs = params["w_sto"].shape[0]
    # TODO(synk): single-image semantic batch assumed; multi-image would add a
    # batch-index scalar prefetch to pick the semantic block per ROI.

    sem_cat = semantic_prepare(
        semantic_feat[0].reshape(Cs_in, Hf * Wf),
        semantic_pred[0].reshape(1, Hf * Wf),
        params["w_sem_in"], params["b_sem_in"], mask_use_sigmoid)
    # (Cs+1, Hf*Wf) -> ((Cs+1)*Hf, Wf): row-major view, free in HBM.
    sem_cw = sem_cat.reshape((Cs + 1) * Hf, Wf)

    dmax = max(dilations)
    mxp, myp = build_roi_align_factors(rois, 1.0 / semantic_out_stride, H, W, Hf, Wf)
    mats = build_fixed_matrices(H, W, dmax)

    xi_flat = instance_feats.reshape(R, Ci, H * W)
    labels = jnp.asarray(roi_labels, jnp.int32)

    preds, fused = _sfm_stage_call(xi_flat, sem_cw, mxp, myp, params, mats, labels,
                                   H=H, W=W, dmax=dmax, dilations=dilations,
                                   use_sigmoid=mask_use_sigmoid)
    instance_preds = preds.reshape(R, 1, H, W)
    fused_feats = fused.reshape(R, fused.shape[1], 2 * H, 2 * W)
    return instance_preds, fused_feats


# ----------------------------------------------------------------------------
if __name__ == "__main__":
    # small config consistent with SFMStage
    c_sem_in = c_sem_out = 16
    c_inst_in = c_inst_out = 16
    num_classes = 4
    out_size = 16
    dilations = (1, 3, 5)
    semantic_out_stride = 4
    R = 2
    Hf = Wf = 32

    key = jax.random.PRNGKey(0)
    kp, k1, k2, k3 = jax.random.split(key, 4)
    params = init_params(kp, c_sem_in=c_sem_in, c_sem_out=c_sem_out,
                         c_inst_in=c_inst_in, c_inst_out=c_inst_out,
                         num_classes=num_classes, dilations=dilations)

    instance_feats = jax.random.normal(k1, (R, c_inst_in, out_size, out_size), jnp.float32)
    semantic_feat = jax.random.normal(k2, (1, c_sem_in, Hf, Wf), jnp.float32)
    semantic_pred = jax.random.normal(k3, (1, 1, Hf, Wf), jnp.float32)
    # rois: (batch_idx, x1, y1, x2, y2) in image coords (stride 4 => 128x128 image)
    rois = np.array([[0.0, 8.0, 12.0, 90.0, 100.0],
                     [0.0, 30.0, 20.0, 120.0, 110.0]], np.float32)
    roi_labels = jnp.array([2, -1], jnp.int32)   # -1 exercises the label clamp

    instance_preds, fused_feats = sfm_stage_forward(
        params, instance_feats, semantic_feat, semantic_pred, rois, roi_labels,
        semantic_out_stride=semantic_out_stride, dilations=dilations,
        mask_use_sigmoid=False)
    instance_preds, fused_feats = jax.block_until_ready((instance_preds, fused_feats))

    assert instance_preds.shape == (R, 1, out_size, out_size), instance_preds.shape
    assert fused_feats.shape == (R, c_inst_out, 2 * out_size, 2 * out_size), fused_feats.shape
    assert bool(jnp.all(jnp.isfinite(instance_preds)))
    assert bool(jnp.all(jnp.isfinite(fused_feats)))
    print("KERNEL_OK")
</pallas_src>

<mosaic_0001>
module attributes {stable_mosaic.version = 11 : i64} {
  func.func @_sem_prep_kernel(%arg0: memref<16x1024xf32, #tpu.memory_space<vmem>>, %arg1: memref<1x1024xf32, #tpu.memory_space<vmem>>, %arg2: memref<16x16xbf16, #tpu.memory_space<vmem>>, %arg3: memref<16x1xf32, #tpu.memory_space<vmem>>, %arg4: memref<17x1024xbf16, #tpu.memory_space<vmem>>) attributes {dimension_semantics = [], scalar_prefetch = 0 : i64, scratch_operands = 0 : i64, tpu.core_type = #tpu.core_type<tc>} {
    %c0 = arith.constant 0 : index
    %c0_0 = arith.constant 0 : index
    %0 = vector.load %arg2[%c0, %c0_0] : memref<16x16xbf16, #tpu.memory_space<vmem>>, vector<16x16xbf16>
    %c0_1 = arith.constant 0 : index
    %c0_2 = arith.constant 0 : index
    %1 = vector.load %arg0[%c0_1, %c0_2] : memref<16x1024xf32, #tpu.memory_space<vmem>>, vector<16x1024xf32>
    %2 = arith.truncf %1 : vector<16x1024xf32> to vector<16x1024xbf16>
    %cst = arith.constant dense<0.000000e+00> : vector<16x1024xf32>
    %3 = tpu.matmul %0, %2, %cst {dimension_numbers = #tpu.dot_dimension_numbers<[1], [0], [0], [1], [0, 0, 1, 1], [], []>} : vector<16x16xbf16>, vector<16x1024xbf16>, vector<16x1024xf32> -> vector<16x1024xf32>
    %c0_3 = arith.constant 0 : index
    %c0_4 = arith.constant 0 : index
    %4 = vector.load %arg3[%c0_3, %c0_4] : memref<16x1xf32, #tpu.memory_space<vmem>>, vector<16x1xf32>
    %5 = vector.broadcast %4 : vector<16x1xf32> to vector<16x1024xf32>
    %6 = arith.addf %3, %5 : vector<16x1024xf32>
    %cst_5 = arith.constant 0.000000e+00 : f32
    %7 = vector.broadcast %cst_5 : f32 to vector<16x1024xf32>
    %8 = arith.maximumf %6, %7 : vector<16x1024xf32>
    %9 = arith.truncf %8 : vector<16x1024xf32> to vector<16x1024xbf16>
    %c0_6 = arith.constant 0 : index
    %c0_7 = arith.constant 0 : index
    %10 = vector.load %arg4[%c0_6, %c0_7] : memref<17x1024xbf16, #tpu.memory_space<vmem>>, vector<16x1024xbf16>
    tpu.vector_store %arg4[%c0_6, %c0_7], %9 {strides = array<i32>} : memref<17x1024xbf16, #tpu.memory_space<vmem>>, vector<16x1024xbf16>,
    %c0_8 = arith.constant 0 : index
    %c0_9 = arith.constant 0 : index
    %11 = vector.load %arg1[%c0_8, %c0_9] : memref<1x1024xf32, #tpu.memory_space<vmem>>, vector<1x1024xf32>
    %12 = arith.truncf %11 : vector<1x1024xf32> to vector<1x1024xbf16>
    %c16 = arith.constant 16 : index
    %c0_10 = arith.constant 0 : index
    %13 = vector.load %arg4[%c16, %c0_10] : memref<17x1024xbf16, #tpu.memory_space<vmem>>, vector<1x1024xbf16>
    tpu.vector_store %arg4[%c16, %c0_10], %12 {strides = array<i32>} : memref<17x1024xbf16, #tpu.memory_space<vmem>>, vector<1x1024xbf16>,
    return
  }
}

</mosaic_0001>

<llo_original>
// kernel: tpu_custom_call.1
$region0: #{tpu_custom_call.1}
  #allocation0 [shape = 'u32[]', space=smem, size = 0x4, offset = 0x4, fixed_abs, tag = 'smem constant byte address 0x4 - core index']
  #allocation1 [shape = 'u32[72,128]{1,0:T(1,128)}', space=vmem, size = 0x9000, scoped, tag = 'internal scratch']
  %s0 = inlined_call_operand.hbm [shape: f32[16,1024], index: 0, kind: input, shape index: {}]
  %s1 = inlined_call_operand.vmem [shape: f32[1,1024], index: 1, kind: input, shape index: {}]
  %s2 = inlined_call_operand.vmem [shape: bf16[16,16], index: 2, kind: input, shape index: {}]
  %s3 = inlined_call_operand.vmem [shape: f32[16,1], index: 3, kind: input, shape index: {}]
  %s4 = inlined_call_operand.hbm [shape: bf16[17,1024], index: 4, kind: output, shape index: {}]
  %s5 = sld [smem:[#allocation0]]
  $region30: #{tpu_custom_call.1} parent=0
    _
  %s7 = ssub.s32 1, %s5
  %s8 = scalar_select 0, %s7, %s5
  $region1: #{tpu_custom_call.1} parent=0
    #allocation2 [shape = 'u8[65536]{0}', space=vmem, size = 0x10000, scoped, tag = 'input window, operand 0, single buffered']
    #allocation3 [shape = 's32[1]{0}', space=sflag, size = 0x4, scoped, tag = 'scoped memory for tpu_custom_call.1']
    #allocation4 [shape = 's32[1]{0}', space=sflag, size = 0x4, scoped, tag = 'scoped memory for tpu_custom_call.1']
    #allocation5 [shape = 'u8[49152]{0}', space=vmem, size = 0xc000, scoped, tag = 'output window, operand 0, single buffered']
    %9 = vsyncpa [#allocation3], 0
    %10 = vsyncpa [#allocation4], 0
    // Predicated region
    $region2: #{tpu_custom_call.1} parent=1 // pred_check
      _
    $region3: #{tpu_custom_call.1} parent=1 // pred_check_branch
      %12 = sbr.rel (0) target = $region5
    $region4: #{tpu_custom_call.1} parent=1 // pred_region
      %14 = vsyncadd [#allocation3], 0
      %s15 = sshll.u32 %s0, 4
      %s16 = int_to_ptr.hbm [resolvable:$true] %s15
      %s17 = sshll.u32 [#allocation2], 4
      %s18 = int_to_ptr.vmem [resolvable:$true] %s17
      %23 = dma.hbm_to_vmem [thread:$0]  %s16, 2048, %s18, [#allocation3], 1024, 1024, 64
    $region5: #{tpu_custom_call.1} parent=1 // pred_fallthru
      _
    // Predicated region
    $region6: #{tpu_custom_call.1} parent=1 // pred_check
      _
    $region7: #{tpu_custom_call.1} parent=1 // pred_check_branch
      %25 = sbr.rel (0) target = $region9
    $region8: #{tpu_custom_call.1} parent=1 // pred_region
      _
    $region9: #{tpu_custom_call.1} parent=1 // pred_fallthru
      _
    // Predicated region
    $region10: #{tpu_custom_call.1} parent=1 // pred_check
      _
    $region11: #{tpu_custom_call.1} parent=1 // pred_check_branch
      %27 = sbr.rel (0) target = $region13
    $region12: #{tpu_custom_call.1} parent=1 // pred_region
      _
    $region13: #{tpu_custom_call.1} parent=1 // pred_fallthru
      _
    // Predicated region
    $region14: #{tpu_custom_call.1} parent=1 // pred_check
      _
    $region15: #{tpu_custom_call.1} parent=1 // pred_check_branch
      %29 = sbr.rel (0) target = $region17
    $region16: #{tpu_custom_call.1} parent=1 // pred_region
      _
    $region17: #{tpu_custom_call.1} parent=1 // pred_fallthru
      _
    // Predicated region
    $region18: #{tpu_custom_call.1} parent=1 // pred_check
      _
    $region19: #{tpu_custom_call.1} parent=1 // pred_check_branch
      %31 = sbr.rel (0) target = $region21
    $region20: #{tpu_custom_call.1} parent=1 // pred_region
      %33 = dma.done [#allocation3], 2048
    $region21: #{tpu_custom_call.1} parent=1 // pred_fallthru
      _
    %v35 = vld [vmem:[%s2] sm:$0xf]
    %v36 = vld [vmem:[%s2 + $0x4] sm:$0xf]
    %v37 = vld [vmem:[#allocation2] sm:$0xff]
    %v38 = vld [vmem:[#allocation2 + $0x8] sm:$0xff]
    %v39 = vld [vmem:[#allocation2 + $0x10] sm:$0xff]
    %v40 = vld [vmem:[#allocation2 + $0x18] sm:$0xff]
    %v41 = vld [vmem:[#allocation2 + $0x20] sm:$0xff]
    %v42 = vld [vmem:[#allocation2 + $0x28] sm:$0xff]
    %v43 = vld [vmem:[#allocation2 + $0x30] sm:$0xff]
    %v44 = vld [vmem:[#allocation2 + $0x38] sm:$0xff]
    %v45 = vld [vmem:[#allocation2 + $0x40] sm:$0xff]
    %v46 = vld [vmem:[#allocation2 + $0x48] sm:$0xff]
    %v47 = vld [vmem:[#allocation2 + $0x50] sm:$0xff]
    %v48 = vld [vmem:[#allocation2 + $0x58] sm:$0xff]
    %v49 = vld [vmem:[#allocation2 + $0x60] sm:$0xff]
    %v50 = vld [vmem:[#allocation2 + $0x68] sm:$0xff]
    %v51 = vld [vmem:[#allocation2 + $0x70] sm:$0xff]
    %v52 = vld [vmem:[#allocation2 + $0x78] sm:$0xff]
    %v53 = vpack.c.bf16 %v45, %v37
    %v54 = vpack.c.bf16 %v46, %v38
    %v55 = vpack.c.bf16 %v47, %v39
    %v56 = vpack.c.bf16 %v48, %v40
    %v57 = vpack.c.bf16 %v49, %v41
    %v58 = vpack.c.bf16 %v50, %v42
    %v59 = vpack.c.bf16 %v51, %v43
    %v60 = vpack.c.bf16 %v52, %v44
    %v61 = vld [vmem:[%s3] sm:$0xff]
    %v62 = vld [vmem:[%s3 + $0x8] sm:$0xff]
    %64 = vset.pattern.permute.xlu0 0
    %65 = vperm.xlu0 %64, %v61
    %v66 = vpop.permute.xlu0 %65
    %69 = vset.pattern.permute.xlu0 0
    %70 = vperm.xlu0 %69, %v62
    %v71 = vpop.permute.xlu0 %70
    %v75 = vunpack.c.l.b16 %v35
    %v76 = vunpack.c.l.b16 %v36
    %v77 = vpack.c.b16 %v76, %v75
    %vm78 = vcmask 130048
    %v80 = vsel %vm78, %v77, 0
    %82 = vmatpush.bf16.msra.mxu0 0
    %83 = vmatpush.bf16.msra.mxu0 0
    %84 = vmatpush.bf16.msra.mxu0 0
    %85 = vmatpush.bf16.msra.mxu0 0
    %86 = vmatpush.bf16.msra.mxu0 0
    %87 = vmatpush.bf16.msra.mxu0 0
    %88 = vmatpush.bf16.msra.mxu0 0
    %89 = vmatpush.bf16.msra.mxu0 %v53
    %90 = vmatmul.bf16.gmra.mxu0 %v80
    %v91 = vpop.f32.mrf.mxu0
    %v92 = vadd.f32 %v66, %v91
    %v93 = vpop.f32.mrf.mxu0
    %v94 = vadd.f32 %v71, %v93
    %95 = vdwg.mxu0
    %96 = vmatpush.bf16.msra.mxu0 0
    %97 = vmatpush.bf16.msra.mxu0 0
    %98 = vmatpush.bf16.msra.mxu0 0
    %99 = vmatpush.bf16.msra.mxu0 0
    %100 = vmatpush.bf16.msra.mxu0 0
    %101 = vmatpush.bf16.msra.mxu0 0
    %102 = vmatpush.bf16.msra.mxu0 0
    %103 = vmatpush.bf16.msra.mxu0 %v54
    %104 = vmatmul.bf16.gmra.mxu0 %v80
    %v105 = vpop.f32.mrf.mxu0
    %v106 = vadd.f32 %v66, %v105
    %v107 = vpop.f32.mrf.mxu0
    %v108 = vadd.f32 %v71, %v107
    %109 = vdwg.mxu0
    %110 = vmatpush.bf16.msra.mxu0 0
    %111 = vmatpush.bf16.msra.mxu0 0
    %112 = vmatpush.bf16.msra.mxu0 0
    %113 = vmatpush.bf16.msra.mxu0 0
    %114 = vmatpush.bf16.msra.mxu0 0
    %115 = vmatpush.bf16.msra.mxu0 0
    %116 = vmatpush.bf16.msra.mxu0 0
    %117 = vmatpush.bf16.msra.mxu0 %v55
    %118 = vmatmul.bf16.gmra.mxu0 %v80
    %v119 = vpop.f32.mrf.mxu0
    %v120 = vadd.f32 %v66, %v119
    %v121 = vpop.f32.mrf.mxu0
    %v122 = vadd.f32 %v71, %v121
    %123 = vdwg.mxu0
    %124 = vmatpush.bf16.msra.mxu0 0
    %125 = vmatpush.bf16.msra.mxu0 0
    %126 = vmatpush.bf16.msra.mxu0 0
    %127 = vmatpush.bf16.msra.mxu0 0
    %128 = vmatpush.bf16.msra.mxu0 0
    %129 = vmatpush.bf16.msra.mxu0 0
    %130 = vmatpush.bf16.msra.mxu0 0
    %131 = vmatpush.bf16.msra.mxu0 %v56
    %132 = vmatmul.bf16.gmra.mxu0 %v80
    %v133 = vpop.f32.mrf.mxu0
    %v134 = vadd.f32 %v66, %v133
    %v135 = vpop.f32.mrf.mxu0
    %v136 = vadd.f32 %v71, %v135
    %137 = vdwg.mxu0
    %138 = vmatpush.bf16.msra.mxu0 0
    %139 = vmatpush.bf16.msra.mxu0 0
    %140 = vmatpush.bf16.msra.mxu0 0
    %141 = vmatpush.bf16.msra.mxu0 0
    %142 = vmatpush.bf16.msra.mxu0 0
    %143 = vmatpush.bf16.msra.mxu0 0
    %144 = vmatpush.bf16.msra.mxu0 0
    %145 = vmatpush.bf16.msra.mxu0 %v57
    %146 = vmatmul.bf16.gmra.mxu0 %v80
    %v147 = vpop.f32.mrf.mxu0
    %v148 = vadd.f32 %v66, %v147
    %v149 = vpop.f32.mrf.mxu0
    %v150 = vadd.f32 %v71, %v149
    %151 = vdwg.mxu0
    %152 = vmatpush.bf16.msra.mxu0 0
    %153 = vmatpush.bf16.msra.mxu0 0
    %154 = vmatpush.bf16.msra.mxu0 0
    %155 = vmatpush.bf16.msra.mxu0 0
    %156 = vmatpush.bf16.msra.mxu0 0
    %157 = vmatpush.bf16.msra.mxu0 0
    %158 = vmatpush.bf16.msra.mxu0 0
    %159 = vmatpush.bf16.msra.mxu0 %v58
    %160 = vmatmul.bf16.gmra.mxu0 %v80
    %v161 = vpop.f32.mrf.mxu0
    %v162 = vadd.f32 %v66, %v161
    %v163 = vpop.f32.mrf.mxu0
    %v164 = vadd.f32 %v71, %v163
    %165 = vdwg.mxu0
    %166 = vmatpush.bf16.msra.mxu0 0
    %167 = vmatpush.bf16.msra.mxu0 0
    %168 = vmatpush.bf16.msra.mxu0 0
    %169 = vmatpush.bf16.msra.mxu0 0
    %170 = vmatpush.bf16.msra.mxu0 0
    %171 = vmatpush.bf16.msra.mxu0 0
    %172 = vmatpush.bf16.msra.mxu0 0
    %173 = vmatpush.bf16.msra.mxu0 %v59
    %174 = vmatmul.bf16.gmra.mxu0 %v80
    %v175 = vpop.f32.mrf.mxu0
    %v176 = vadd.f32 %v66, %v175
    %v177 = vpop.f32.mrf.mxu0
    %v178 = vadd.f32 %v71, %v177
    %179 = vdwg.mxu0
    %180 = vmatpush.bf16.msra.mxu0 0
    %181 = vmatpush.bf16.msra.mxu0 0
    %182 = vmatpush.bf16.msra.mxu0 0
    %183 = vmatpush.bf16.msra.mxu0 0
    %184 = vmatpush.bf16.msra.mxu0 0
    %185 = vmatpush.bf16.msra.mxu0 0
    %186 = vmatpush.bf16.msra.mxu0 0
    %187 = vmatpush.bf16.msra.mxu0 %v60
    %188 = vmatmul.bf16.gmra.mxu0 %v80
    %v189 = vpop.f32.mrf.mxu0
    %v190 = vadd.f32 %v66, %v189
    %v191 = vpop.f32.mrf.mxu0
    %v192 = vadd.f32 %v71, %v191
    %193 = vdwg.mxu0
    %v194 = vmax.f32 %v92, 0.0
    %v195 = vmax.f32 %v106, 0.0
    %v196 = vmax.f32 %v120, 0.0
    %v197 = vmax.f32 %v134, 0.0
    %v198 = vmax.f32 %v148, 0.0
    %v199 = vmax.f32 %v162, 0.0
    %v200 = vmax.f32 %v176, 0.0
    %v201 = vmax.f32 %v190, 0.0
    %v202 = vmax.f32 %v94, 0.0
    %v203 = vmax.f32 %v108, 0.0
    %v204 = vmax.f32 %v122, 0.0
    %v205 = vmax.f32 %v136, 0.0
    %v206 = vmax.f32 %v150, 0.0
    %v207 = vmax.f32 %v164, 0.0
    %v208 = vmax.f32 %v178, 0.0
    %v209 = vmax.f32 %v192, 0.0
    %v210 = vpack.c.bf16 %v195, %v194
    %v211 = vpack.c.bf16 %v197, %v196
    %v212 = vpack.c.bf16 %v199, %v198
    %v213 = vpack.c.bf16 %v201, %v200
    %v214 = vpack.c.bf16 %v203, %v202
    %v215 = vpack.c.bf16 %v205, %v204
    %v216 = vpack.c.bf16 %v207, %v206
    %v217 = vpack.c.bf16 %v209, %v208
    %218 = vst [vmem:[#allocation5] sm:$0xff] %v210
    %219 = vst [vmem:[#allocation5 + $0x8] sm:$0xff] %v211
    %220 = vst [vmem:[#allocation5 + $0x10] sm:$0xff] %v212
    %221 = vst [vmem:[#allocation5 + $0x18] sm:$0xff] %v213
    %222 = vst [vmem:[#allocation5 + $0x20] sm:$0xff] %v214
    %223 = vst [vmem:[#allocation5 + $0x28] sm:$0xff] %v215
    %224 = vst [vmem:[#allocation5 + $0x30] sm:$0xff] %v216
    %225 = vst [vmem:[#allocation5 + $0x38] sm:$0xff] %v217
    %v226 = vld [vmem:[%s1] sm:$0xff]
    %v228 = vperm.slane %v226, 0
    %v229 = vperm.slane %v226, 1
    %v230 = vperm.slane %v226, 2
    %v231 = vperm.slane %v226, 3
    %v232 = vperm.slane %v226, 4
    %v233 = vperm.slane %v226, 5
    %v234 = vperm.slane %v226, 6
    %v235 = vperm.slane %v226, 7
    %v244 = vpack.c.bf16 %v229, %v228
    %v245 = vpack.c.bf16 %v231, %v230
    %v246 = vpack.c.bf16 %v233, %v232
    %v247 = vpack.c.bf16 %v235, %v234
    %vm248 = vcmask 1040384
    %vm249 = vsmask.f32 256
    %vm250 = vmand %vm248, %vm249
    %vm251 = vcmask 1044484
    %vm252 = vsmask.f32 4352
    %vm253 = vmand %vm251, %vm252
    %vm254 = vmor %vm253, %vm250
    %v255 = vld [vmem:[#allocation5 + $0x40] sm:$0x11]
    %v256 = vsel %vm254, %v244, %v255
    %257 = vst [vmem:[#allocation5 + $0x40] sm:$0x11] %v256
    %v258 = vld [vmem:[#allocation5 + $0x48] sm:$0x11]
    %v259 = vsel %vm254, %v245, %v258
    %260 = vst [vmem:[#allocation5 + $0x48] sm:$0x11] %v259
    %v261 = vld [vmem:[#allocation5 + $0x50] sm:$0x11]
    %v262 = vsel %vm254, %v246, %v261
    %263 = vst [vmem:[#allocation5 + $0x50] sm:$0x11] %v262
    %v264 = vld [vmem:[#allocation5 + $0x58] sm:$0x11]
    %v265 = vsel %vm254, %v247, %v264
    %266 = vst [vmem:[#allocation5 + $0x58] sm:$0x11] %v265
    // Predicated region
    $region22: #{tpu_custom_call.1} parent=1 // pred_check
      _
    $region23: #{tpu_custom_call.1} parent=1 // pred_check_branch
      %268 = sbr.rel (0) target = $region25
    $region24: #{tpu_custom_call.1} parent=1 // pred_region
      %270 = vsyncadd [#allocation4], 0
      %s271 = sshll.u32 [#allocation5], 4
      %s272 = int_to_ptr.vmem [resolvable:$true] %s271
      %s273 = sshll.u32 %s4, 4
      %s274 = int_to_ptr.hbm [resolvable:$true] %s273
      %279 = dma.vmem_to_hbm [thread:$0]  %s272, 1536, %s274, [#allocation4], 512, 512, 32
    $region25: #{tpu_custom_call.1} parent=1 // pred_fallthru
      _
    // Predicated region
    $region26: #{tpu_custom_call.1} parent=1 // pred_check
      _
    $region27: #{tpu_custom_call.1} parent=1 // pred_check_branch
      %281 = sbr.rel (0) target = $region29
    $region28: #{tpu_custom_call.1} parent=1 // pred_region
      %283 = dma.done [#allocation4], 1536
    $region29: #{tpu_custom_call.1} parent=1 // pred_fallthru
      _
    %284 = vsyncpa [#allocation3], 1
    %285 = vsyncpa [#allocation4], 1

</llo_original>
